<compile_context>
chip_gen: v6e
topology: v6e:2x2x1
jax: 0.10.0
libtpu: 0.0.40
codegen_flags: <defaults>
</compile_context>

<pallas_src>
import functools

import jax
import jax.numpy as jnp
import numpy as np
from jax.experimental import pallas as pl
from jax.experimental.pallas import tpu as pltpu

SPOC_EPS = 1e-6


def _spoc_kernel(x_ref, o_ref, acc_ref, *, inv_hw, eps, tile_hw, hw_total, mask_hw):
    """One (batch, channel-tile, hw-tile) grid step.

    x_ref  : (tile_c, tile_hw)  input block (HW on lanes)
    o_ref  : (1, tile_c)        lane-dense output block, resident across the hw axis
    acc_ref: (tile_c, 1) f32    running spatial sum
    """
    hw = pl.program_id(2)

    @pl.when(hw == 0)
    def _init():
        acc_ref[...] = jnp.zeros_like(acc_ref)

    # Clamp in f32 (f32 accumulation for sub-f32 inputs; no-op cast for f32).
    x = jnp.maximum(x_ref[...].astype(jnp.float32), eps)
    if mask_hw:
        # Zero out lanes past the real spatial extent on the ragged last HW tile.
        lane = jax.lax.broadcasted_iota(jnp.int32, x.shape, 1)
        x = jnp.where(hw * tile_hw + lane < hw_total, x, 0.0)

    # XLU cross-lane reduce -> (tile_c, 1); accumulate across HW tiles.
    acc_ref[...] += jnp.sum(x, axis=-1, keepdims=True)

    @pl.when(hw == pl.num_programs(2) - 1)
    def _finalize():
        # mean = sum * (1/HW); relayout (tile_c, 1) -> (1, tile_c) so the output
        # store is lane-dense (unmasked vst, dense output DMA).
        mean = acc_ref[...] * inv_hw
        o_ref[...] = jnp.transpose(mean).astype(o_ref.dtype)


def _pick_tiles(C, HW, itemsize, budget_bytes=8 << 20):
    """Choose (tile_c, tile_hw).

    tile_c  is a multiple of the packed sublane count (8 f32 / 16 bf16 / 32 int8).
    tile_hw is either the full HW (preferred: no reduction-axis steps) or a
            multiple of 128.  One (tile_c, tile_hw) block stays under budget_bytes.
    """
    sub = 8 * max(1, 4 // itemsize)               # packed sublane granularity
    c_ceil = ((C + sub - 1) // sub) * sub         # C rounded up to a full packed tile

    if sub * HW * itemsize <= budget_bytes:
        tile_hw = HW                              # whole spatial extent in one block
        max_c = budget_bytes // (HW * itemsize)
        tile_c = max(sub, min(c_ceil, (max_c // sub) * sub))
    else:
        tile_c = sub                              # HW must be tiled (reduction axis)
        max_hw = budget_bytes // (sub * itemsize)
        tile_hw = max(128, (max_hw // 128) * 128)
    return tile_c, tile_hw


def spoc(x_nchw, *, eps=SPOC_EPS):
    """SPoC pooling: avg_pool2d(x.clamp(min=eps), (H, W)) -> (B, C, 1, 1)."""
    B, C, H, W = x_nchw.shape
    HW = H * W
    x3d = x_nchw.reshape(B, C, HW)                # free metadata reshape, native layout

    itemsize = x3d.dtype.itemsize
    tile_c, tile_hw = _pick_tiles(C, HW, itemsize)
    c_tiles = pl.cdiv(C, tile_c)
    hw_tiles = pl.cdiv(HW, tile_hw)
    grid = (B, c_tiles, hw_tiles)

    kernel = functools.partial(
        _spoc_kernel,
        inv_hw=1.0 / float(HW),
        eps=float(eps),
        tile_hw=tile_hw,
        hw_total=HW,
        mask_hw=(HW % tile_hw) != 0,
    )

    out = pl.pallas_call(
        kernel,
        out_shape=jax.ShapeDtypeStruct((B, c_tiles, tile_c), x_nchw.dtype),
        grid=grid,
        in_specs=[
            pl.BlockSpec((pl.Squeezed(), tile_c, tile_hw),
                         lambda b, c, hw: (b, c, hw)),
        ],
        out_specs=pl.BlockSpec((pl.Squeezed(), 1, tile_c),
                               lambda b, c, hw: (b, c, 0)),
        scratch_shapes=[pltpu.VMEM((tile_c, 1), jnp.float32)],
        compiler_params=pltpu.CompilerParams(
            dimension_semantics=("parallel", "parallel", "arbitrary"),
            vmem_limit_bytes=32 << 20,
        ),
        cost_estimate=pl.CostEstimate(
            flops=2 * B * C * HW,
            transcendentals=0,
            bytes_accessed=B * C * HW * itemsize + B * C * itemsize,
        ),
    )(x3d)

    # Drop channel padding introduced by cdiv tiling, restore (B, C, 1, 1).
    return out.reshape(B, c_tiles * tile_c)[:, :C].reshape(B, C, 1, 1)


def reference(x_nchw, *, eps=SPOC_EPS):
    """Pure-JAX mirror of the PyTorch forward: F.avg_pool2d(x.clamp(min=eps), (H, W))."""
    return jnp.mean(jnp.maximum(x_nchw, eps), axis=(2, 3), keepdims=True)


if __name__ == "__main__":
    B, C, H, W = 2, 4, 16, 16

    key = jax.random.PRNGKey(0)
    x = jax.random.normal(key, (B, C, H, W), jnp.float32)

    out = jax.block_until_ready(spoc(x))
    ref = jax.block_until_ready(reference(x))

    np.testing.assert_allclose(np.asarray(out), np.asarray(ref),
                               rtol=1e-5, atol=1e-6)
    assert out.shape == (B, C, 1, 1)
    print("KERNEL_OK")
</pallas_src>

<mosaic_0001>
module attributes {stable_mosaic.version = 11 : i64} {
  func.func @_spoc_kernel(%arg0: i32, %arg1: i32, %arg2: i32, %arg3: memref<1x8x256xf32, #tpu.memory_space<vmem>>, %arg4: memref<1x1x8xf32, #tpu.memory_space<vmem>>, %arg5: memref<8x1xf32, #tpu.memory_space<vmem>>) attributes {dimension_semantics = [#tpu.dimension_semantics<parallel>, #tpu.dimension_semantics<parallel>, #tpu.dimension_semantics<arbitrary>], iteration_bounds = array<i64: 2, 1, 1>, scalar_prefetch = 0 : i64, scratch_operands = 1 : i64, tpu.core_type = #tpu.core_type<tc>, window_params = [{transform_indices = @transform_0, window_bounds = array<i64: 1, 8, 256>}, {transform_indices = @transform_1, window_bounds = array<i64: 1, 1, 8>}]} {
    %c0_i32 = arith.constant 0 : i32
    %0 = arith.cmpi eq, %arg2, %c0_i32 : i32
    %1 = arith.extui %0 : i1 to i32
    %c0_i32_0 = arith.constant 0 : i32
    %2 = arith.cmpi ne, %1, %c0_i32_0 : i32
    scf.if %2 {
      %cst_10 = arith.constant 0.000000e+00 : f32
      %15 = vector.broadcast %cst_10 : f32 to vector<8x1xf32>
      %c0_11 = arith.constant 0 : index
      %c0_12 = arith.constant 0 : index
      %16 = vector.load %arg5[%c0_11, %c0_12] : memref<8x1xf32, #tpu.memory_space<vmem>>, vector<8x1xf32>
      tpu.vector_store %arg5[%c0_11, %c0_12], %15 {strides = array<i32>} : memref<8x1xf32, #tpu.memory_space<vmem>>, vector<8x1xf32>,
    } else {
    }
    %c0 = arith.constant 0 : index
    %c0_1 = arith.constant 0 : index
    %c0_2 = arith.constant 0 : index
    %3 = vector.load %arg3[%c0, %c0_1, %c0_2] : memref<1x8x256xf32, #tpu.memory_space<vmem>>, vector<1x8x256xf32>
    %4 = vector.shape_cast %3 : vector<1x8x256xf32> to vector<8x256xf32>
    %cst = arith.constant 9.99999997E-7 : f32
    %5 = vector.broadcast %cst : f32 to vector<8x256xf32>
    %6 = arith.maximumf %4, %5 : vector<8x256xf32>
    %c0_3 = arith.constant 0 : index
    %c0_4 = arith.constant 0 : index
    %7 = vector.load %arg5[%c0_3, %c0_4] : memref<8x1xf32, #tpu.memory_space<vmem>>, vector<8x1xf32>
    %cst_5 = arith.constant dense<0.000000e+00> : vector<8xf32>
    %8 = vector.multi_reduction <add>, %6, %cst_5 [1] : vector<8x256xf32> to vector<8xf32>
    %9 = vector.shape_cast %8 : vector<8xf32> to vector<8x1xf32>
    %10 = arith.addf %7, %9 : vector<8x1xf32>
    %c0_6 = arith.constant 0 : index
    %c0_7 = arith.constant 0 : index
    %11 = vector.load %arg5[%c0_6, %c0_7] : memref<8x1xf32, #tpu.memory_space<vmem>>, vector<8x1xf32>
    tpu.vector_store %arg5[%c0_6, %c0_7], %10 {strides = array<i32>} : memref<8x1xf32, #tpu.memory_space<vmem>>, vector<8x1xf32>,
    %c0_i32_8 = arith.constant 0 : i32
    %12 = arith.cmpi eq, %arg2, %c0_i32_8 : i32
    %13 = arith.extui %12 : i1 to i32
    %c0_i32_9 = arith.constant 0 : i32
    %14 = arith.cmpi ne, %13, %c0_i32_9 : i32
    scf.if %14 {
      %c0_10 = arith.constant 0 : index
      %c0_11 = arith.constant 0 : index
      %15 = vector.load %arg5[%c0_10, %c0_11] : memref<8x1xf32, #tpu.memory_space<vmem>>, vector<8x1xf32>
      %cst_12 = arith.constant 3.906250e-03 : f32
      %16 = vector.broadcast %cst_12 : f32 to vector<8x1xf32>
      %17 = arith.mulf %15, %16 : vector<8x1xf32>
      %18 = tpu.transpose %17, [1, 0] : vector<8x1xf32> -> vector<1x8xf32>
      %c0_13 = arith.constant 0 : index
      %c0_14 = arith.constant 0 : index
      %c0_15 = arith.constant 0 : index
      %19 = vector.load %arg4[%c0_13, %c0_14, %c0_15] : memref<1x1x8xf32, #tpu.memory_space<vmem>>, vector<1x1x8xf32>
      %20 = vector.shape_cast %19 : vector<1x1x8xf32> to vector<1x8xf32>
      %21 = vector.shape_cast %18 : vector<1x8xf32> to vector<1x1x8xf32>
      tpu.vector_store %arg4[%c0_13, %c0_14, %c0_15], %21 {strides = array<i32>} : memref<1x1x8xf32, #tpu.memory_space<vmem>>, vector<1x1x8xf32>,
    } else {
    }
    return
  }
  func.func @transform_0(%arg0: i32, %arg1: i32, %arg2: i32) -> (i32, i32, i32) {
    %c0_i32 = arith.constant 0 : i32
    return %arg0, %arg1, %arg2 : i32, i32, i32
  }
  func.func @transform_1(%arg0: i32, %arg1: i32, %arg2: i32) -> (i32, i32, i32) {
    %c0_i32 = arith.constant 0 : i32
    %c0_i32_0 = arith.constant 0 : i32
    return %arg0, %arg1, %c0_i32 : i32, i32, i32
  }
}

</mosaic_0001>

<llo_original>
// kernel: tpu_custom_call.1
$region0: #{tpu_custom_call.1}
  #allocation0 [shape = 'u32[]', space=smem, size = 0x4, offset = 0x4, fixed_abs, tag = 'smem constant byte address 0x4 - core index']
  #allocation1 [shape = 'u32[144,128]{1,0:T(1,128)}', space=vmem, size = 0x12000, scoped, tag = 'internal scratch']
  #allocation2 [shape = 'f32[8,1]{1,0:T(8,128)}', space=vmem, size = 0x1000, scoped, tag = 'scratch operand']
  %s0 = inlined_call_operand.hbm [shape: f32[2,4,256], index: 0, kind: input, shape index: {}]
  %s1 = inlined_call_operand.hbm [shape: f32[2,1,8], index: 1, kind: output, shape index: {}]
  %s2 = sld [smem:[#allocation0]]
  $region49: #{tpu_custom_call.1} parent=0
    _
  %s4 = ssub.s32 1, %s2
  %s5 = scalar_select 0, %s4, %s2
  $region1: #{tpu_custom_call.1} parent=0
    #allocation3 [shape = 'u8[16384]{0}', space=vmem, size = 0x4000, scoped, tag = 'input window, operand 0']
    #allocation4 [shape = 's32[2]{0}', space=sflag, size = 0x8, scoped, tag = 'scoped memory for tpu_custom_call.1']
    #allocation5 [shape = 's32[2]{0}', space=sflag, size = 0x8, scoped, tag = 'scoped memory for tpu_custom_call.1']
    #allocation6 [shape = 'u8[1024]{0}', space=vmem, size = 0x400, scoped, tag = 'output window, operand 0']
    %6 = vsyncpa [#allocation4], 0
    %s7 = scalar_lea.sflag [#allocation4], 1
    %8 = vsyncpa %s7, 0
    %9 = vsyncpa [#allocation5], 0
    %s10 = scalar_lea.sflag [#allocation5], 1
    %11 = vsyncpa %s10, 0
    loop: start=0, step=1, limit=4
    $region2: #{tpu_custom_call.1} parent=1 // loop_pre_header
      _
    $region3: #{tpu_custom_call.1} parent=1 // loop_header
      %s13 = sphi 0, %s17
      %p14 = scmp.ge.s32.totalorder %s13, 4
      %s20 = sphi 0, %s39
      %s21 = sphi 0, %s35
      %s22 = sphi 0, %s31
      %s23 = sphi 0, %s20
      %s24 = sphi 0, %s21
      %s25 = sphi 0, %s22
      %s26 = sphi 0, %s23
      %s27 = sphi 0, %s24
      %s28 = sphi 0, %s25
      %s46 = sphi 0, %s48
      %s49 = sphi 0, %s46
      %s50 = sphi 0, %s49
      %s66 = sphi 0, %s50
      %s74 = sphi 0, %s76
      %s77 = sphi 0, %s74
      %s78 = sphi 0, %s77
      %s94 = sphi 0, %s78
    $region4: #{tpu_custom_call.1} parent=1 // loop_header_branch
      %16 = sbr.rel (%p14) target = $region8
    $region5: #{tpu_custom_call.1} parent=1 // loop_body
      %s18 = ssub.s32 %s13, 1
      %s19 = ssub.s32 %s13, 2
      %s29 = sadd.s32 1, %s22
      %p30 = scmp.ge.s32.totalorder %s29, 1
      %s31 = scalar_select %p30, 0, %s29
      %s32 = sadd.s32 1, %s21
      %s33 = scalar_select %p30, %s32, %s21
      %p34 = scmp.ge.s32.totalorder %s33, 1
      %s35 = scalar_select %p34, 0, %s33
      %s36 = sadd.s32 1, %s20
      %s37 = scalar_select %p34, %s36, %s20
      %p38 = scmp.ge.s32.totalorder %s37, 2
      %s39 = scalar_select %p38, 0, %s37
      %s40 = ssub.s32 %s20, %s39
      %s41 = ssub.s32 %s21, %s35
      %s42 = sor.u32 %s40, %s41
      %s43 = ssub.s32 %s22, %s31
      %s44 = sor.u32 %s42, %s43
      %p45 = scmp.eq.s32.totalorder %s44, 0
      %s47 = sadd.s32 %s46, 1
      %s48 = scalar_select %p45, %s46, %s47
      %p51 = pneg %p45
      %p52 = scmp.eq.s32.totalorder %s13, 1
      %p53 = por %p51, %p52
      %p54 = scmp.ne.s32.totalorder %s46, %s49
      %p55 = scmp.eq.s32.totalorder %s13, 0
      %p56 = por %p54, %p55
      %p57 = scmp.ne.s32.totalorder %s46, %s49
      %p58 = scmp.eq.s32.totalorder %s18, 1
      %p59 = por %p57, %p58
      %p60 = scmp.ne.s32.totalorder %s49, %s50
      %p61 = scmp.eq.s32.totalorder %s18, 0
      %p62 = por %p60, %p61
      %p63 = scmp.ne.s32.totalorder %s49, %s50
      %p64 = scmp.eq.s32.totalorder %s19, 1
      %p65 = por %p63, %p64
      %p67 = scmp.ne.s32.totalorder %s50, %s66
      %p68 = scmp.eq.s32.totalorder %s19, 0
      %p69 = por %p67, %p68
      %s70 = ssub.s32 %s20, %s39
      %s71 = ssub.s32 %s21, %s35
      %s72 = sor.u32 %s70, %s71
      %p73 = scmp.eq.s32.totalorder %s72, 0
      %s75 = sadd.s32 %s74, 1
      %s76 = scalar_select %p73, %s74, %s75
      %p79 = pneg %p73
      %p80 = scmp.eq.s32.totalorder %s13, 1
      %p81 = por %p79, %p80
      %p82 = scmp.ne.s32.totalorder %s74, %s77
      %p83 = scmp.eq.s32.totalorder %s13, 0
      %p84 = por %p82, %p83
      %p85 = scmp.ne.s32.totalorder %s74, %s77
      %p86 = scmp.eq.s32.totalorder %s18, 1
      %p87 = por %p85, %p86
      %p88 = scmp.ne.s32.totalorder %s77, %s78
      %p89 = scmp.eq.s32.totalorder %s18, 0
      %p90 = por %p88, %p89
      %p91 = scmp.ne.s32.totalorder %s77, %s78
      %p92 = scmp.eq.s32.totalorder %s19, 1
      %p93 = por %p91, %p92
      %p95 = scmp.ne.s32.totalorder %s78, %s94
      %p96 = scmp.eq.s32.totalorder %s19, 0
      %p97 = por %p95, %p96
      %p98 = scmp.le.s32.totalorder 1, %s13
      %p99 = scmp.lt.s32.totalorder %s13, 3
      %p100 = pnand %p98, %p99
      %p101 = pneg %p100
      // Predicated region
      $region9: #{tpu_custom_call.1} parent=5 // pred_check
        _
      $region10: #{tpu_custom_call.1} parent=5 // pred_check_branch
        %103 = sbr.rel (%p100) target = $region12
      $region11: #{tpu_custom_call.1} parent=5 // pred_region
        %s104 = ssub.s32 %s13, 1
      $region12: #{tpu_custom_call.1} parent=5 // pred_fallthru
        _
      %p105 = scmp.lt.s32.totalorder %s13, 2
      // Predicated region
      $region13: #{tpu_custom_call.1} parent=5 // pred_check
        %p106 = pneg %p105
      $region14: #{tpu_custom_call.1} parent=5 // pred_check_branch
        %108 = sbr.rel (%p106) target = $region16
      $region15: #{tpu_custom_call.1} parent=5 // pred_region
        // Predicated region
        $region17: #{tpu_custom_call.1} parent=15 // pred_check
          %p109 = pneg %p56
        $region18: #{tpu_custom_call.1} parent=15 // pred_check_branch
          %111 = sbr.rel (%p109) target = $region20
        $region19: #{tpu_custom_call.1} parent=15 // pred_region
          %s112 = sand.u32 %s46, 1
          %s113 = scalar_lea.sflag [#allocation4], %s112
          %s114 = sand.u32 %s46, 1
          %s115 = smul.addr %s114, 16
          %s116 = scalar_lea.vmem [#allocation3], %s115
          %s117 = smul.u32 2, %s21
          %s118 = smul.u32 2, %s22
          %s119 = ssub.s32 1, %s117
          %s120 = smul.u32 64, %s119
          %s121 = smul.u32 %s120, 2
          %s123 = ssub.s32 256, %s121
          %124 = vsyncadd %s113, %s123
          %p125 = scmp.ne.s32.totalorder 0, %s121
          %s126 = smul.addr %s117, 2
          %s127 = sadd.s32 %s118, %s126
          %s128 = smul.addr %s20, 2
          %s129 = sadd.s32 %s127, %s128
          %s130 = smul.addr %s129, 64
          %s131 = scalar_lea.hbm %s0, %s130
          %s132 = smul.u32 8, %s119
          %s133 = sshll.u32 %s116, 4
          %s134 = int_to_ptr.vmem [resolvable:$true] %s133
          %s135 = sshll.u32 %s132, 4
          %139 = dma.hbm_to_vmem [thread:$0]  (%p125), %s131, %s135, %s134, %s113, 128, 128, 8
        $region20: #{tpu_custom_call.1} parent=15 // pred_fallthru
          _
      $region16: #{tpu_custom_call.1} parent=5 // pred_fallthru
        _
      %p140 = scmp.le.s32.totalorder 1, %s13
      %p141 = scmp.lt.s32.totalorder %s13, 3
      %p142 = pnand %p140, %p141
      %p143 = pneg %p142
      // Predicated region
      $region21: #{tpu_custom_call.1} parent=5 // pred_check
        _
      $region22: #{tpu_custom_call.1} parent=5 // pred_check_branch
        %145 = sbr.rel (%p142) target = $region24
      $region23: #{tpu_custom_call.1} parent=5 // pred_region
        %s146 = ssub.s32 %s13, 1
        %s147 = sand.u32 %s49, 1
        %s148 = scalar_lea.sflag [#allocation4], %s147
        %s149 = sand.u32 %s49, 1
        %s150 = smul.addr %s149, 16
        %s151 = scalar_lea.vmem [#allocation3], %s150
        // Predicated region
        $region25: #{tpu_custom_call.1} parent=23 // pred_check
          %p152 = pneg %p62
        $region26: #{tpu_custom_call.1} parent=23 // pred_check_branch
          %154 = sbr.rel (%p152) target = $region28
        $region27: #{tpu_custom_call.1} parent=23 // pred_region
          %155 = dma.done %s148, 256
        $region28: #{tpu_custom_call.1} parent=23 // pred_fallthru
          _
        %s156 = sand.u32 %s49, 1
        %s157 = scalar_lea.sflag [#allocation4], %s156
        %s158 = sand.u32 %s49, 1
        %s159 = smul.addr %s158, 16
        %s160 = scalar_lea.vmem [#allocation3], %s159
        %p161 = pneg %p62
        %p162 = pneg %p59
        %p163 = pneg %p90
        %p164 = pneg %p87
        %s165 = sand.u32 %s77, 1
        %s166 = scalar_lea.sflag [#allocation5], %s165
        %s167 = sand.u32 %s77, 1
        %s168 = scalar_lea.vmem [#allocation6], %s167
        %s169 = smul.u32 2, %s24
        %s170 = smul.u32 2, %s25
        %s171 = ssub.s32 1, %s169
        %s172 = smul.u32 64, %s171
        %s173 = smul.u32 %s172, 2
        %p174 = scmp.eq.s32.totalorder %s25, 0
        // Predicated region
        $region29: #{tpu_custom_call.1} parent=23 // pred_check
          %p175 = pneg %p174
        $region30: #{tpu_custom_call.1} parent=23 // pred_check_branch
          %177 = sbr.rel (%p175) target = $region32
        $region31: #{tpu_custom_call.1} parent=23 // pred_region
          %vm178 = vcmask 7168
          %179 = vst.msk [vmem:[#allocation2] sm:$0xff] %vm178, 0.0
        $region32: #{tpu_custom_call.1} parent=23 // pred_fallthru
          _
        %v180 = vld [vmem:[%s151] sm:$0xff]
        %v181 = vld [vmem:[%s151 + $0x8] sm:$0xff]
        %v182 = vmax.f32 %v180, 1e-06
        %v183 = vmax.f32 %v181, 1e-06
        %v184 = vld [vmem:[#allocation2] sm:$0xff]
        %v187 = vcombine.low %v182, %v183
        %v188 = vcombine.high %v182, %v183
        %v191 = vadd.f32 %v187, %v188
        %192 = vadd.xlane.f32.xlu0 %v191
        %v193 = vpop.xlane.xlu0 %192
        %v194 = vadd.f32 %v184, %v193
        %vm195 = vcmask 7168
        %196 = vst.msk [vmem:[#allocation2] sm:$0xff] %vm195, %v194
        // Predicated region
        $region33: #{tpu_custom_call.1} parent=23 // pred_check
          %p197 = pneg %p174
        $region34: #{tpu_custom_call.1} parent=23 // pred_check_branch
          %199 = sbr.rel (%p197) target = $region36
        $region35: #{tpu_custom_call.1} parent=23 // pred_region
          %v200 = vld [vmem:[#allocation2] sm:$0xff]
          %v201 = vmul.f32 %v200, 0.00390625
          %202 = vxpose.xlu0.b32.start [1/16] %v201, 128
          %203 = vxpose.xlu0.b32.cont [2/16] 0.0, 128
          %204 = vxpose.xlu0.b32.cont [3/16] 0.0, 128
          %205 = vxpose.xlu0.b32.cont [4/16] 0.0, 128
          %206 = vxpose.xlu0.b32.cont [5/16] 0.0, 128
          %207 = vxpose.xlu0.b32.cont [6/16] 0.0, 128
          %208 = vxpose.xlu0.b32.cont [7/16] 0.0, 128
          %209 = vxpose.xlu0.b32.cont [8/16] 0.0, 128
          %210 = vxpose.xlu0.b32.cont [9/16] 0.0, 128
          %211 = vxpose.xlu0.b32.cont [10/16] 0.0, 128
          %212 = vxpose.xlu0.b32.cont [11/16] 0.0, 128
          %213 = vxpose.xlu0.b32.cont [12/16] 0.0, 128
          %214 = vxpose.xlu0.b32.cont [13/16] 0.0, 128
          %215 = vxpose.xlu0.b32.cont [14/16] 0.0, 128
          %216 = vxpose.xlu0.b32.cont [15/16] 0.0, 128
          %217 = vxpose.xlu0.b32.end [16/16] 0.0, 128
          %v218 = vpop.trf.xlu0
          %v219 = vpop.trf.xlu0
          %v220 = vpop.trf.xlu0
          %v221 = vpop.trf.xlu0
          %v222 = vpop.trf.xlu0
          %v223 = vpop.trf.xlu0
          %v224 = vpop.trf.xlu0
          %v225 = vpop.trf.xlu0
          %v226 = vpop.trf.xlu0
          %v227 = vpop.trf.xlu0
          %v228 = vpop.trf.xlu0
          %v229 = vpop.trf.xlu0
          %v230 = vpop.trf.xlu0
          %v231 = vpop.trf.xlu0
          %v232 = vpop.trf.xlu0
          %v233 = vpop.trf.xlu0
          %vm234 = vcmask 57344
          %235 = vst.msk [vmem:[%s168] sm:$0x1] %vm234, %v218
        $region36: #{tpu_custom_call.1} parent=23 // pred_fallthru
          _
        %s236 = sand.u32 %s77, 1
        %s237 = scalar_lea.sflag [#allocation5], %s236
        %s238 = sand.u32 %s77, 1
        %s239 = scalar_lea.vmem [#allocation6], %s238
        // Predicated region
        $region37: #{tpu_custom_call.1} parent=23 // pred_check
          %p240 = pneg %p87
        $region38: #{tpu_custom_call.1} parent=23 // pred_check_branch
          %242 = sbr.rel (%p240) target = $region40
        $region39: #{tpu_custom_call.1} parent=23 // pred_region
          %s244 = ssub.s32 16, 16
          %245 = vsyncadd %s237, %s244
          %s246 = sadd.s32 %s24, %s23
          %s247 = smul.addr %s246, 16
          %s248 = scalar_lea.hbm %s1, %s247
          %s250 = sshll.u32 %s239, 4
          %s251 = int_to_ptr.vmem [resolvable:$true] %s250
          %253 = dma.vmem_to_hbm [thread:$0]  %s251, 16, %s248, %s237
        $region40: #{tpu_custom_call.1} parent=23 // pred_fallthru
          _
      $region24: #{tpu_custom_call.1} parent=5 // pred_fallthru
        _
      %p254 = scmp.le.s32.totalorder 2, %s13
      // Predicated region
      $region41: #{tpu_custom_call.1} parent=5 // pred_check
        %p255 = pneg %p254
      $region42: #{tpu_custom_call.1} parent=5 // pred_check_branch
        %257 = sbr.rel (%p255) target = $region44
      $region43: #{tpu_custom_call.1} parent=5 // pred_region
        %s258 = ssub.s32 %s13, 2
        // Predicated region
        $region45: #{tpu_custom_call.1} parent=43 // pred_check
          %p259 = pneg %p93
        $region46: #{tpu_custom_call.1} parent=43 // pred_check_branch
          %261 = sbr.rel (%p259) target = $region48
        $region47: #{tpu_custom_call.1} parent=43 // pred_region
          %s262 = sand.u32 %s78, 1
          %s263 = scalar_lea.sflag [#allocation5], %s262
          %s264 = sand.u32 %s78, 1
          %s265 = scalar_lea.vmem [#allocation6], %s264
          %266 = dma.done %s263, 16
        $region48: #{tpu_custom_call.1} parent=43 // pred_fallthru
          _
      $region44: #{tpu_custom_call.1} parent=5 // pred_fallthru
        _
    $region6: #{tpu_custom_call.1} parent=1 // loop_footer
      %s17 = sadd.s32 1, %s13
    $region7: #{tpu_custom_call.1} parent=1 // loop_footer_branch
      %12 = sbr.rel target = $region3
    $region8: #{tpu_custom_call.1} parent=1 // loop_exit
      _
    %267 = vsyncpa [#allocation4], 1
    %s268 = scalar_lea.sflag [#allocation4], 1
    %269 = vsyncpa %s268, 1
    %270 = vsyncpa [#allocation5], 1
    %s271 = scalar_lea.sflag [#allocation5], 1
    %272 = vsyncpa %s271, 1

</llo_original>
